<compile_context>
chip_gen: v5e
topology: v5e:2x2
jax: 0.10.0
libtpu: 0.0.40
codegen_flags: <defaults>
</compile_context>

<pallas_src>
import functools
import math

import jax
import jax.numpy as jnp
from jax import lax
from jax.experimental import pallas as pl
from jax.experimental.pallas import tpu as pltpu


MXU_DTYPE = jnp.bfloat16            # MXU operand dtype; accumulation stays f32.
VMEM_LIMIT = 64 * 1024 * 1024       # explicit scoped-VMEM budget (fits all gens).


# ------------------------------ in-kernel helpers ------------------------------

def _gelu(y):
    # TODO(synk): PyTorch activation='gelu' is the exact erf form; tanh
    # approximation used here (erf has no guaranteed Mosaic lowering).
    c = math.sqrt(2.0 / math.pi)
    return 0.5 * y * (1.0 + jnp.tanh(c * (y + 0.044715 * y * y * y)))


def _layernorm(x, g, b):
    mean = jnp.mean(x, axis=-1, keepdims=True)
    xc = x - mean
    var = jnp.mean(xc * xc, axis=-1, keepdims=True)   # biased variance (PyTorch LN)
    return xc * lax.rsqrt(var + 1e-5) * g + b


def _mxu_dot(a, b):
    """(M,K)x(K,N) on the MXU, bf16 operands (weights arrive pre-cast), f32 acc."""
    return jnp.dot(a.astype(MXU_DTYPE), b.astype(MXU_DTYPE),
                   preferred_element_type=jnp.float32)


def _mxu_dot_nt(a, b):
    """(M,K)x(N,K)->(M,N): contraction on the last axis of both operands so the
    MXU consumes K directly without an explicit XLU transpose of `b`."""
    return lax.dot_general(a.astype(MXU_DTYPE), b.astype(MXU_DTYPE),
                           (((1,), (1,)), ((), ())),
                           preferred_element_type=jnp.float32)


# ----------------------- fused transformer stack (all layers) -------------------

def _layer_block(x, in_w, in_b, out_w, out_b, ln1_g, ln1_b,
                 ff1_w, ff1_b, ff2_w, ff2_b, ln2_g, ln2_b,
                 *, num_heads, seq_len):
    """One post-norm TransformerEncoderLayer on an (M, E) row slab, M = Bt*S.

    QKV proj, out-proj, both LayerNorms and the MLP operate on all Bt samples
    at once (M rows feeding the MXU); only the score/softmax loop is per
    sample.  Heads accumulate through the out-projection (no lane concat).
    1/sqrt(Dh) is pre-folded into the Q columns of in_w/in_b by the wrapper.
    """
    M, E = x.shape
    batch_tile = M // seq_len
    head_dim = E // num_heads

    qkv = _mxu_dot(x, in_w) + in_b                               # (M, 3E) f32

    per_sample = []
    for bi in range(batch_tile):
        r0 = bi * seq_len
        q = qkv[r0:r0 + seq_len, 0:E]                            # pre-scaled Q
        k = qkv[r0:r0 + seq_len, E:2 * E]
        v = qkv[r0:r0 + seq_len, 2 * E:3 * E]
        acc = jnp.zeros((seq_len, E), jnp.float32)
        for h in range(num_heads):
            c0 = h * head_dim
            s = _mxu_dot_nt(q[:, c0:c0 + head_dim], k[:, c0:c0 + head_dim])  # (S,S)
            s = s - jnp.max(s, axis=-1, keepdims=True)
            p = jnp.exp(s)
            p = p * pl.reciprocal(jnp.sum(p, axis=-1, keepdims=True), approx=True)
            ctx = _mxu_dot(p, v[:, c0:c0 + head_dim])                        # (S,Dh)
            # Accumulate each head straight through its out-projection slice.
            acc = acc + _mxu_dot(ctx, out_w[c0:c0 + head_dim, :])            # (S,E)
        per_sample.append(acc)
    attn = per_sample[0] if batch_tile == 1 else jnp.concatenate(per_sample, axis=0)
    attn = attn + out_b

    # Residual + LayerNorm 1 (post-norm, PyTorch default norm_first=False).
    h1 = _layernorm(x + attn, ln1_g, ln1_b)

    # MLP with bias + GELU fused into the matmul epilogue.
    ff = _gelu(_mxu_dot(h1, ff1_w) + ff1_b)
    ff = _mxu_dot(ff, ff2_w) + ff2_b

    return _layernorm(h1 + ff, ln2_g, ln2_b)


def _stacked_layers_kernel(x_ref, in_w_ref, in_b_ref, out_w_ref, out_b_ref,
                           ln1_g_ref, ln1_b_ref, ff1_w_ref, ff1_b_ref,
                           ff2_w_ref, ff2_b_ref, ln2_g_ref, ln2_b_ref,
                           o_ref, *, num_heads, seq_len):
    """grid = (B/Bt, L).  The token slab lives in the (revisited) output block
    across the layer axis; layer l reads it, applies one encoder layer, writes
    it back.  Layer l+1's weights are prefetched by the BlockSpec pipeline."""
    layer = pl.program_id(1)

    @pl.when(layer == 0)
    def _():
        o_ref[...] = x_ref[...]

    x = o_ref[...]                                               # (M, E) f32
    o_ref[...] = _layer_block(
        x, in_w_ref[0], in_b_ref[...], out_w_ref[0], out_b_ref[...],
        ln1_g_ref[...], ln1_b_ref[...], ff1_w_ref[0], ff1_b_ref[...],
        ff2_w_ref[0], ff2_b_ref[...], ln2_g_ref[...], ln2_b_ref[...],
        num_heads=num_heads, seq_len=seq_len)


def _choose_batch_tile(B, S):
    """Fold batch rows into the matmul M dimension.  Aim for M = Bt*S >= 256
    (one full 256-wide MXU pass); keep >= 2 batch blocks when that is free
    (v7x has 2 TensorCores); only sub-tile batch when the resulting block row
    count stays sublane-aligned."""
    best = B
    for d in range(1, B + 1):
        if B % d:
            continue
        if d * S >= 256 and (d == B or (d * S) % 8 == 0):
            best = d
            break
    if best == B and B % 2 == 0 and ((B // 2) * S) % 8 == 0 and (B // 2) * S >= 256:
        best = B // 2
    return best


def transformer_stack(x, stacked, num_heads):
    """x: (B, S, E) f32, stacked: dict of (L, ...) parameter arrays (weights bf16).
    One pallas_call for the whole stack; batch blocks 'parallel', layer axis
    'arbitrary' (sequential, weight DMA for layer l+1 hidden behind layer l)."""
    B, S, E = x.shape
    L = stacked["in_w"].shape[0]
    Bt = _choose_batch_tile(B, S)
    M = Bt * S
    x2 = x.reshape(B * S, E)

    def w3(d1, d2):
        return pl.BlockSpec((1, d1, d2), lambda b, l: (l, 0, 0))

    def w2(d1):
        return pl.BlockSpec((1, d1), lambda b, l: (l, 0))

    tok_spec = pl.BlockSpec((M, E), lambda b, l: (b, 0))

    out = pl.pallas_call(
        functools.partial(_stacked_layers_kernel, num_heads=num_heads, seq_len=S),
        out_shape=jax.ShapeDtypeStruct((B * S, E), jnp.float32),
        grid=(B // Bt, L),
        in_specs=[
            tok_spec,
            w3(E, 3 * E), w2(3 * E),          # in_w (bf16), in_b
            w3(E, E), w2(E),                  # out_w (bf16), out_b
            w2(E), w2(E),                     # ln1_g, ln1_b
            w3(E, 4 * E), w2(4 * E),          # ff1_w (bf16), ff1_b
            w3(4 * E, E), w2(E),              # ff2_w (bf16), ff2_b
            w2(E), w2(E),                     # ln2_g, ln2_b
        ],
        out_specs=tok_spec,
        compiler_params=pltpu.CompilerParams(
            dimension_semantics=("parallel", "arbitrary"),
            vmem_limit_bytes=VMEM_LIMIT),
    )(x2,
      stacked["in_w"], stacked["in_b"], stacked["out_w"], stacked["out_b"],
      stacked["ln1_g"], stacked["ln1_b"], stacked["ff1_w"], stacked["ff1_b"],
      stacked["ff2_w"], stacked["ff2_b"], stacked["ln2_g"], stacked["ln2_b"])
    return out.reshape(B, S, E)


def stack_layer_params(layers, num_heads):
    """Stack per-layer params along a leading L axis; cast matmul weights to
    bf16 (halves HBM->VMEM weight traffic); fold 1/sqrt(Dh) into the Q
    projection so the kernel never scales the (S,S) score matrix."""
    E = layers[0]["in_w"].shape[0]
    scale = 1.0 / math.sqrt(E // num_heads)

    def st(name):
        return jnp.stack([lp[name] for lp in layers], axis=0)

    in_w = st("in_w").at[:, :, :E].multiply(scale)
    in_b = st("in_b").at[:, :E].multiply(scale)
    return {
        "in_w": in_w.astype(MXU_DTYPE), "in_b": in_b,
        "out_w": st("out_w").astype(MXU_DTYPE), "out_b": st("out_b"),
        "ln1_g": st("ln1_g"), "ln1_b": st("ln1_b"),
        "ff1_w": st("ff1_w").astype(MXU_DTYPE), "ff1_b": st("ff1_b"),
        "ff2_w": st("ff2_w").astype(MXU_DTYPE), "ff2_b": st("ff2_b"),
        "ln2_g": st("ln2_g"), "ln2_b": st("ln2_b"),
    }


# ------------------------------ tiled linear ----------------------------------

def _linear_kernel(x_ref, w_ref, b_ref, o_ref, acc_ref, *, activation):
    @pl.when(pl.program_id(2) == 0)
    def _():
        acc_ref[...] = jnp.zeros_like(acc_ref)

    acc_ref[...] += _mxu_dot(x_ref[...], w_ref[...])

    @pl.when(pl.program_id(2) == pl.num_programs(2) - 1)
    def _():
        y = acc_ref[...] + b_ref[...]
        if activation == "gelu":
            y = _gelu(y)
        o_ref[...] = y


def _choose_tile(dim, candidates):
    for c in candidates:
        if c <= dim and dim % c == 0:
            return c
    return dim


def linear(x, w, b, activation=None):
    """x: (M, K) f32, w: (K, N) bf16, b: (N,) f32 -> (M, N) f32.
    grid=(M/tm, N/tn, K/tk) with a VMEM f32 accumulator and bias(+GELU) fused
    into the K epilogue.  256-aligned tm/tn match the 256-wide MXU; deep bf16
    K tiles cut epilogue visits.  Toy shapes collapse to single full blocks."""
    M, K = x.shape
    N = w.shape[1]
    tm = _choose_tile(M, (512, 256, 128, 64, 32, 16, 8))
    tn = _choose_tile(N, (512, 256, 128))
    tk = _choose_tile(K, (2048, 1024, 512, 256, 128))
    grid = (M // tm, N // tn, K // tk)
    return pl.pallas_call(
        functools.partial(_linear_kernel, activation=activation),
        out_shape=jax.ShapeDtypeStruct((M, N), jnp.float32),
        grid=grid,
        in_specs=[
            pl.BlockSpec((tm, tk), lambda i, j, k: (i, k)),
            pl.BlockSpec((tk, tn), lambda i, j, k: (k, j)),
            pl.BlockSpec((1, tn), lambda i, j, k: (0, j)),
        ],
        out_specs=pl.BlockSpec((tm, tn), lambda i, j, k: (i, j)),
        scratch_shapes=[pltpu.VMEM((tm, tn), jnp.float32)],
        compiler_params=pltpu.CompilerParams(
            dimension_semantics=("parallel", "parallel", "arbitrary"),
            vmem_limit_bytes=VMEM_LIMIT),
    )(x, w, b.reshape(1, N))


# ------------------------------- masked MSE ------------------------------------

def _masked_mse_kernel(pred_ref, tgt_ref, mask_ref, o_ref, num_ref, den_ref):
    @pl.when(pl.program_id(0) == 0)
    def _():
        num_ref[...] = jnp.zeros_like(num_ref)
        den_ref[...] = jnp.zeros_like(den_ref)

    d = pred_ref[...] - tgt_ref[...]
    m = mask_ref[...]                                   # (tm, 1), broadcast over P
    num_ref[...] += jnp.sum(d * d * m, keepdims=True)   # (1, 1)
    den_ref[...] += jnp.sum(m, keepdims=True)

    @pl.when(pl.program_id(0) == pl.num_programs(0) - 1)
    def _():
        # Matches PyTorch: sum(mask * mean_P(d^2)) / sum(mask).
        # (No zero-mask guard, same as the reference; mask_ratio>0 in practice.)
        o_ref[...] = num_ref[...] / (den_ref[...] * pred_ref.shape[-1])


def masked_mse(pred, target, mask):
    """Tiled over the token axis so pred/target never need to fit VMEM whole."""
    M, P = pred.shape
    tm = _choose_tile(M, (512, 256, 128, 64, 32, 16, 8))
    out = pl.pallas_call(
        _masked_mse_kernel,
        out_shape=jax.ShapeDtypeStruct((1, 1), jnp.float32),
        grid=(M // tm,),
        in_specs=[
            pl.BlockSpec((tm, P), lambda i: (i, 0)),
            pl.BlockSpec((tm, P), lambda i: (i, 0)),
            pl.BlockSpec((tm, 1), lambda i: (i, 0)),
        ],
        out_specs=pl.BlockSpec((1, 1), lambda i: (0, 0)),
        scratch_shapes=[pltpu.VMEM((1, 1), jnp.float32),
                        pltpu.VMEM((1, 1), jnp.float32)],
        compiler_params=pltpu.CompilerParams(
            dimension_semantics=("arbitrary",),
            vmem_limit_bytes=VMEM_LIMIT),
    )(pred, target, mask)
    return out[0, 0]


# -------------------------------- parameters -----------------------------------

def xavier_uniform(key, fan_in, fan_out, shape):
    limit = math.sqrt(6.0 / (fan_in + fan_out))
    return jax.random.uniform(key, shape, jnp.float32, -limit, limit)


def init_layer_params(key, d_model, d_ff):
    ks = jax.random.split(key, 4)
    return {
        "in_w": xavier_uniform(ks[0], d_model, 3 * d_model, (d_model, 3 * d_model)),
        "in_b": jnp.zeros((3 * d_model,), jnp.float32),
        "out_w": xavier_uniform(ks[1], d_model, d_model, (d_model, d_model)),
        "out_b": jnp.zeros((d_model,), jnp.float32),
        "ln1_g": jnp.ones((d_model,), jnp.float32),
        "ln1_b": jnp.zeros((d_model,), jnp.float32),
        "ff1_w": xavier_uniform(ks[2], d_model, d_ff, (d_model, d_ff)),
        "ff1_b": jnp.zeros((d_ff,), jnp.float32),
        "ff2_w": xavier_uniform(ks[3], d_ff, d_model, (d_ff, d_model)),
        "ff2_b": jnp.zeros((d_model,), jnp.float32),
        "ln2_g": jnp.ones((d_model,), jnp.float32),
        "ln2_b": jnp.zeros((d_model,), jnp.float32),
    }


def init_params(key, cfg):
    C, psz, E, De = cfg["in_channels"], cfg["patch_size"], cfg["embed_dim"], cfg["dec_dim"]
    N = cfg["num_patches"]
    patch_dim = psz * psz * C
    keys = jax.random.split(key, 8 + cfg["enc_depth"] + cfg["dec_depth"])
    conv_fan_in = C * psz * psz
    bound = 1.0 / math.sqrt(conv_fan_in)
    return {
        "conv_w": jax.random.uniform(keys[0], (E, C, psz, psz), jnp.float32, -bound, bound),
        "conv_b": jnp.zeros((E,), jnp.float32),
        "pos_embed": 0.02 * jax.random.normal(keys[1], (1, N, E), jnp.float32),
        "dec_pos_embed": 0.02 * jax.random.normal(keys[2], (1, N, De), jnp.float32),
        "mask_token": 0.02 * jax.random.normal(keys[3], (1, 1, De), jnp.float32),
        "dec_embed_w": xavier_uniform(keys[4], E, De, (E, De)),
        "dec_embed_b": jnp.zeros((De,), jnp.float32),
        "dec_pred_w": xavier_uniform(keys[5], De, patch_dim, (De, patch_dim)),
        "dec_pred_b": jnp.zeros((patch_dim,), jnp.float32),
        "enc_layers": [init_layer_params(keys[8 + i], E, 4 * E)
                       for i in range(cfg["enc_depth"])],
        "dec_layers": [init_layer_params(keys[8 + cfg["enc_depth"] + i], De, 4 * De)
                       for i in range(cfg["dec_depth"])],
    }


# ---------------------------------- forward -------------------------------------

def patchify(imgs, psz):
    B, C, H, W = imgs.shape
    h = H // psz
    x = imgs.reshape(B, C, h, psz, h, psz)
    x = x.transpose(0, 2, 4, 3, 5, 1)                  # 'nchpwq -> nhwpqc'
    return x.reshape(B, h * h, psz * psz * C)


def mae_forward(params, imgs, mask_key, cfg):
    B, C, H, W = imgs.shape
    psz, E, De = cfg["patch_size"], cfg["embed_dim"], cfg["dec_dim"]
    h = H // psz
    N = h * h

    # Patch embedding: Conv2d(k=s=patch) == matmul over (C,p,p)-flattened patches.
    patches = imgs.reshape(B, C, h, psz, h, psz).transpose(0, 2, 4, 1, 3, 5)
    patches = patches.reshape(B * N, C * psz * psz)
    conv_w = params["conv_w"].reshape(E, C * psz * psz).T.astype(MXU_DTYPE)
    x = linear(patches, conv_w, params["conv_b"]).reshape(B, N, E)
    x = x + params["pos_embed"]

    # Random masking (noise / argsort / gather kept in plain JAX glue).
    len_keep = int(N * (1 - cfg["mask_ratio"]))
    noise = jax.random.uniform(mask_key, (B, N))
    ids_shuffle = jnp.argsort(noise, axis=1)
    ids_restore = jnp.argsort(ids_shuffle, axis=1)
    ids_keep = ids_shuffle[:, :len_keep]
    x_masked = jnp.take_along_axis(x, ids_keep[:, :, None], axis=1)
    mask = jnp.ones((B, N), jnp.float32).at[:, :len_keep].set(0.0)
    mask = jnp.take_along_axis(mask, ids_restore, axis=1)

    # Encoder: one fused pallas_call for the whole layer stack.
    enc_stack = stack_layer_params(params["enc_layers"], cfg["enc_heads"])
    latent = transformer_stack(x_masked, enc_stack, cfg["enc_heads"])

    # Decoder.
    xd = linear(latent.reshape(B * len_keep, E),
                params["dec_embed_w"].astype(MXU_DTYPE),
                params["dec_embed_b"]).reshape(B, len_keep, De)
    mask_tokens = jnp.broadcast_to(params["mask_token"], (B, N - len_keep, De))
    x_ = jnp.concatenate([xd, mask_tokens], axis=1)
    x_ = jnp.take_along_axis(x_, ids_restore[:, :, None], axis=1)
    xd = x_ + params["dec_pos_embed"]
    dec_stack = stack_layer_params(params["dec_layers"], cfg["dec_heads"])
    xd = transformer_stack(xd, dec_stack, cfg["dec_heads"])
    pred = linear(xd.reshape(B * N, De),
                  params["dec_pred_w"].astype(MXU_DTYPE),
                  params["dec_pred_b"]).reshape(B, N, psz * psz * C)

    # Loss (MSE on masked patches only).
    target = patchify(imgs, psz)
    loss = masked_mse(pred.reshape(B * N, -1), target.reshape(B * N, -1),
                      mask.reshape(B * N, 1))
    return loss, pred, mask


# ----------------------------------- main ----------------------------------------

if __name__ == "__main__":
    cfg = dict(img_size=32, patch_size=8, in_channels=3, embed_dim=64,
               enc_depth=2, enc_heads=4, dec_dim=32, dec_depth=1, dec_heads=4,
               mask_ratio=0.75)
    cfg["num_patches"] = (cfg["img_size"] // cfg["patch_size"]) ** 2

    key = jax.random.PRNGKey(0)
    pkey, xkey, mkey = jax.random.split(key, 3)
    params = init_params(pkey, cfg)
    imgs = jax.random.normal(
        xkey, (2, cfg["in_channels"], cfg["img_size"], cfg["img_size"]), jnp.float32)

    loss, pred, mask = mae_forward(params, imgs, mkey, cfg)
    jax.block_until_ready((loss, pred, mask))

    assert pred.shape == (2, cfg["num_patches"],
                          cfg["patch_size"] ** 2 * cfg["in_channels"])
    assert mask.shape == (2, cfg["num_patches"])
    assert loss.shape == ()
    assert bool(jnp.isfinite(loss))
    print("KERNEL_OK")
</pallas_src>

<mosaic_0001>
module attributes {stable_mosaic.version = 11 : i64} {
  func.func @_linear_kernel(%arg0: i32, %arg1: i32, %arg2: i32, %arg3: memref<32x192xf32, #tpu.memory_space<vmem>>, %arg4: memref<192x64xbf16, #tpu.memory_space<vmem>>, %arg5: memref<1x64xf32, #tpu.memory_space<vmem>>, %arg6: memref<32x64xf32, #tpu.memory_space<vmem>>, %arg7: memref<32x64xf32, #tpu.memory_space<vmem>>) attributes {dimension_semantics = [#tpu.dimension_semantics<parallel>, #tpu.dimension_semantics<parallel>, #tpu.dimension_semantics<arbitrary>], iteration_bounds = array<i64: 1, 1, 1>, scalar_prefetch = 0 : i64, scratch_operands = 1 : i64, tpu.core_type = #tpu.core_type<tc>, window_params = [{transform_indices = @transform_0, window_bounds = array<i64: 32, 192>}, {transform_indices = @transform_1, window_bounds = array<i64: 192, 64>}, {transform_indices = @transform_2, window_bounds = array<i64: 1, 64>}, {transform_indices = @transform_3, window_bounds = array<i64: 32, 64>}]} {
    %c0_i32 = arith.constant 0 : i32
    %0 = arith.cmpi eq, %arg2, %c0_i32 : i32
    %1 = arith.extui %0 : i1 to i32
    %c0_i32_0 = arith.constant 0 : i32
    %2 = arith.cmpi ne, %1, %c0_i32_0 : i32
    scf.if %2 {
      %cst_10 = arith.constant 0.000000e+00 : f32
      %13 = vector.broadcast %cst_10 : f32 to vector<32x64xf32>
      %c0_11 = arith.constant 0 : index
      %c0_12 = arith.constant 0 : index
      %14 = vector.load %arg7[%c0_11, %c0_12] : memref<32x64xf32, #tpu.memory_space<vmem>>, vector<32x64xf32>
      tpu.vector_store %arg7[%c0_11, %c0_12], %13 {strides = array<i32>} : memref<32x64xf32, #tpu.memory_space<vmem>>, vector<32x64xf32>,
    } else {
    }
    %c0 = arith.constant 0 : index
    %c0_1 = arith.constant 0 : index
    %3 = vector.load %arg7[%c0, %c0_1] : memref<32x64xf32, #tpu.memory_space<vmem>>, vector<32x64xf32>
    %c0_2 = arith.constant 0 : index
    %c0_3 = arith.constant 0 : index
    %4 = vector.load %arg3[%c0_2, %c0_3] : memref<32x192xf32, #tpu.memory_space<vmem>>, vector<32x192xf32>
    %c0_4 = arith.constant 0 : index
    %c0_5 = arith.constant 0 : index
    %5 = vector.load %arg4[%c0_4, %c0_5] : memref<192x64xbf16, #tpu.memory_space<vmem>>, vector<192x64xbf16>
    %6 = arith.truncf %4 : vector<32x192xf32> to vector<32x192xbf16>
    %cst = arith.constant dense<0.000000e+00> : vector<32x64xf32>
    %7 = tpu.matmul %6, %5, %cst {dimension_numbers = #tpu.dot_dimension_numbers<[1], [0], [0], [1], [0, 0, 1, 1], [], []>} : vector<32x192xbf16>, vector<192x64xbf16>, vector<32x64xf32> -> vector<32x64xf32>
    %8 = arith.addf %3, %7 : vector<32x64xf32>
    %c0_6 = arith.constant 0 : index
    %c0_7 = arith.constant 0 : index
    %9 = vector.load %arg7[%c0_6, %c0_7] : memref<32x64xf32, #tpu.memory_space<vmem>>, vector<32x64xf32>
    tpu.vector_store %arg7[%c0_6, %c0_7], %8 {strides = array<i32>} : memref<32x64xf32, #tpu.memory_space<vmem>>, vector<32x64xf32>,
    %c0_i32_8 = arith.constant 0 : i32
    %10 = arith.cmpi eq, %arg2, %c0_i32_8 : i32
    %11 = arith.extui %10 : i1 to i32
    %c0_i32_9 = arith.constant 0 : i32
    %12 = arith.cmpi ne, %11, %c0_i32_9 : i32
    scf.if %12 {
      %c0_10 = arith.constant 0 : index
      %c0_11 = arith.constant 0 : index
      %13 = vector.load %arg7[%c0_10, %c0_11] : memref<32x64xf32, #tpu.memory_space<vmem>>, vector<32x64xf32>
      %c0_12 = arith.constant 0 : index
      %c0_13 = arith.constant 0 : index
      %14 = vector.load %arg5[%c0_12, %c0_13] : memref<1x64xf32, #tpu.memory_space<vmem>>, vector<1x64xf32>
      %15 = vector.broadcast %14 : vector<1x64xf32> to vector<32x64xf32>
      %16 = arith.addf %13, %15 : vector<32x64xf32>
      %c0_14 = arith.constant 0 : index
      %c0_15 = arith.constant 0 : index
      %17 = vector.load %arg6[%c0_14, %c0_15] : memref<32x64xf32, #tpu.memory_space<vmem>>, vector<32x64xf32>
      tpu.vector_store %arg6[%c0_14, %c0_15], %16 {strides = array<i32>} : memref<32x64xf32, #tpu.memory_space<vmem>>, vector<32x64xf32>,
    } else {
    }
    return
  }
  func.func @transform_0(%arg0: i32, %arg1: i32, %arg2: i32) -> (i32, i32) {
    %c0_i32 = arith.constant 0 : i32
    return %arg0, %arg2 : i32, i32
  }
  func.func @transform_1(%arg0: i32, %arg1: i32, %arg2: i32) -> (i32, i32) {
    %c0_i32 = arith.constant 0 : i32
    return %arg2, %arg1 : i32, i32
  }
  func.func @transform_2(%arg0: i32, %arg1: i32, %arg2: i32) -> (i32, i32) {
    %c0_i32 = arith.constant 0 : i32
    %c0_i32_0 = arith.constant 0 : i32
    return %c0_i32, %arg1 : i32, i32
  }
  func.func @transform_3(%arg0: i32, %arg1: i32, %arg2: i32) -> (i32, i32) {
    %c0_i32 = arith.constant 0 : i32
    return %arg0, %arg1 : i32, i32
  }
}

</mosaic_0001>

<llo_original>
// kernel: tpu_custom_call.1
$region0: #{tpu_custom_call.1}
  #allocation0 [shape = 'u32[]', space=smem, size = 0x4, offset = 0x4, fixed_abs, tag = 'smem constant byte address 0x4 - core index']
  #allocation1 [shape = 'u32[72,128]{1,0:T(1,128)}', space=vmem, size = 0x9000, scoped, tag = 'internal scratch']
  #allocation2 [shape = 'f32[32,64]{1,0:T(8,128)}', space=vmem, size = 0x4000, scoped, tag = 'scratch operand']
  %s0 = inlined_call_operand.vmem [shape: f32[32,192], index: 0, kind: input, shape index: {}]
  %s1 = inlined_call_operand.vmem [shape: bf16[192,64], index: 1, kind: input, shape index: {}]
  %s2 = inlined_call_operand.vmem [shape: f32[1,64], index: 2, kind: input, shape index: {}]
  %s3 = inlined_call_operand.hbm [shape: f32[32,64], index: 3, kind: output, shape index: {}]
  %s4 = sld [smem:[#allocation0]]
  $region30: #{tpu_custom_call.1} parent=0
    _
  %s6 = ssub.s32 1, %s4
  %s7 = scalar_select 0, %s6, %s4
  $region1: #{tpu_custom_call.1} parent=0
    #allocation3 [shape = 'u8[16384]{0}', space=vmem, size = 0x4000, scoped, tag = 'output window, operand 0, single buffered']
    #allocation4 [shape = 's32[1]{0}', space=sflag, size = 0x4, scoped, tag = 'scoped memory for tpu_custom_call.1']
    %8 = vsyncpa [#allocation4], 0
    // Predicated region
    $region2: #{tpu_custom_call.1} parent=1 // pred_check
      _
    $region3: #{tpu_custom_call.1} parent=1 // pred_check_branch
      %10 = sbr.rel (0) target = $region5
    $region4: #{tpu_custom_call.1} parent=1 // pred_region
      _
    $region5: #{tpu_custom_call.1} parent=1 // pred_fallthru
      _
    // Predicated region
    $region6: #{tpu_custom_call.1} parent=1 // pred_check
      _
    $region7: #{tpu_custom_call.1} parent=1 // pred_check_branch
      %12 = sbr.rel (0) target = $region9
    $region8: #{tpu_custom_call.1} parent=1 // pred_region
      _
    $region9: #{tpu_custom_call.1} parent=1 // pred_fallthru
      _
    // Predicated region
    $region10: #{tpu_custom_call.1} parent=1 // pred_check
      _
    $region11: #{tpu_custom_call.1} parent=1 // pred_check_branch
      %14 = sbr.rel (0) target = $region13
    $region12: #{tpu_custom_call.1} parent=1 // pred_region
      _
    $region13: #{tpu_custom_call.1} parent=1 // pred_fallthru
      _
    %p16 = scmp.eq.s32.totalorder 0, 0
    // Predicated region
    $region14: #{tpu_custom_call.1} parent=1 // pred_check
      %p17 = pneg %p16
    $region15: #{tpu_custom_call.1} parent=1 // pred_check_branch
      %19 = sbr.rel (%p17) target = $region17
    $region16: #{tpu_custom_call.1} parent=1 // pred_region
      %vm20 = vcmask 523264
      %21 = vst.msk [vmem:[#allocation2] sm:$0xff] %vm20, 0.0
      %22 = vst.msk [vmem:[#allocation2 + $0x8] sm:$0xff] %vm20, 0.0
      %23 = vst.msk [vmem:[#allocation2 + $0x10] sm:$0xff] %vm20, 0.0
      %24 = vst.msk [vmem:[#allocation2 + $0x18] sm:$0xff] %vm20, 0.0
    $region17: #{tpu_custom_call.1} parent=1 // pred_fallthru
      _
    %v25 = vld [vmem:[#allocation2] sm:$0xff]
    %v26 = vld [vmem:[#allocation2 + $0x8] sm:$0xff]
    %v27 = vld [vmem:[#allocation2 + $0x10] sm:$0xff]
    %v28 = vld [vmem:[#allocation2 + $0x18] sm:$0xff]
    %v29 = vld [vmem:[%s0] sm:$0xff]
    %v30 = vld [vmem:[%s0 + $0x8] sm:$0xff]
    %v31 = vld [vmem:[%s0 + $0x10] sm:$0xff]
    %v32 = vld [vmem:[%s0 + $0x18] sm:$0xff]
    %v33 = vld [vmem:[%s0 + $0x20] sm:$0xff]
    %v34 = vld [vmem:[%s0 + $0x28] sm:$0xff]
    %v35 = vld [vmem:[%s0 + $0x30] sm:$0xff]
    %v36 = vld [vmem:[%s0 + $0x38] sm:$0xff]
    %v37 = vld [vmem:[%s1] sm:$0xf]
    %v38 = vld [vmem:[%s1 + $0x4] sm:$0xf]
    %v39 = vld [vmem:[%s1 + $0x8] sm:$0xf]
    %v40 = vld [vmem:[%s1 + $0xc] sm:$0xf]
    %v41 = vld [vmem:[%s1 + $0x10] sm:$0xf]
    %v42 = vld [vmem:[%s1 + $0x14] sm:$0xf]
    %v43 = vld [vmem:[%s1 + $0x18] sm:$0xf]
    %v44 = vld [vmem:[%s1 + $0x1c] sm:$0xf]
    %v45 = vld [vmem:[%s1 + $0x20] sm:$0xf]
    %v46 = vld [vmem:[%s1 + $0x24] sm:$0xf]
    %v47 = vld [vmem:[%s1 + $0x28] sm:$0xf]
    %v48 = vld [vmem:[%s1 + $0x2c] sm:$0xf]
    %v49 = vld [vmem:[%s1 + $0x30] sm:$0xf]
    %v50 = vld [vmem:[%s1 + $0x34] sm:$0xf]
    %v51 = vld [vmem:[%s1 + $0x38] sm:$0xf]
    %v52 = vld [vmem:[%s1 + $0x3c] sm:$0xf]
    %v53 = vld [vmem:[%s1 + $0x40] sm:$0xf]
    %v54 = vld [vmem:[%s1 + $0x44] sm:$0xf]
    %v55 = vld [vmem:[%s1 + $0x48] sm:$0xf]
    %v56 = vld [vmem:[%s1 + $0x4c] sm:$0xf]
    %v57 = vld [vmem:[%s1 + $0x50] sm:$0xf]
    %v58 = vld [vmem:[%s1 + $0x54] sm:$0xf]
    %v59 = vld [vmem:[%s1 + $0x58] sm:$0xf]
    %v60 = vld [vmem:[%s1 + $0x5c] sm:$0xf]
    %v61 = vpack.c.bf16 %v31, %v29
    %v62 = vpack.c.bf16 %v32, %v30
    %v63 = vpack.c.bf16 %v35, %v33
    %v64 = vpack.c.bf16 %v36, %v34
    %v89 = vunpack.c.l.b16 %v37
    %v90 = vunpack.c.l.b16 %v38
    %v91 = vunpack.c.l.b16 %v39
    %v92 = vunpack.c.l.b16 %v40
    %v93 = vunpack.c.l.b16 %v41
    %v94 = vunpack.c.l.b16 %v42
    %v95 = vunpack.c.l.b16 %v43
    %v96 = vunpack.c.l.b16 %v44
    %v97 = vunpack.c.l.b16 %v45
    %v98 = vunpack.c.l.b16 %v46
    %v99 = vunpack.c.l.b16 %v47
    %v100 = vunpack.c.l.b16 %v48
    %v101 = vunpack.c.l.b16 %v49
    %v102 = vunpack.c.l.b16 %v50
    %v103 = vunpack.c.l.b16 %v51
    %v104 = vunpack.c.l.b16 %v52
    %v105 = vunpack.c.l.b16 %v53
    %v106 = vunpack.c.l.b16 %v54
    %v107 = vunpack.c.l.b16 %v55
    %v108 = vunpack.c.l.b16 %v56
    %v109 = vunpack.c.l.b16 %v57
    %v110 = vunpack.c.l.b16 %v58
    %v111 = vunpack.c.l.b16 %v59
    %v112 = vunpack.c.l.b16 %v60
    %v113 = vpack.c.b16 %v90, %v89
    %v114 = vpack.c.b16 %v92, %v91
    %v115 = vpack.c.b16 %v94, %v93
    %v116 = vpack.c.b16 %v96, %v95
    %v117 = vpack.c.b16 %v98, %v97
    %v118 = vpack.c.b16 %v100, %v99
    %v119 = vpack.c.b16 %v102, %v101
    %v120 = vpack.c.b16 %v104, %v103
    %v121 = vpack.c.b16 %v106, %v105
    %v122 = vpack.c.b16 %v108, %v107
    %v123 = vpack.c.b16 %v110, %v109
    %v124 = vpack.c.b16 %v112, %v111
    %vm137 = vcmask 523264
    %v139 = vsel %vm137, %v62, 0
    %v142 = vsel %vm137, %v64, 0
    %144 = vmatpush.bf16.msra.mxu0 %v120
    %145 = vmatpush.bf16.msra.mxu0 %v119
    %146 = vmatpush.bf16.msra.mxu0 %v118
    %147 = vmatpush.bf16.msra.mxu0 %v117
    %148 = vmatpush.bf16.msra.mxu0 %v116
    %149 = vmatpush.bf16.msra.mxu0 %v115
    %150 = vmatpush.bf16.msra.mxu0 %v114
    %151 = vmatpush.bf16.msra.mxu0 %v113
    %152 = vmatmul.bf16.gmra.mxu0 %v61
    %v153 = vpop.f32.mrf.mxu0
    %v154 = vadd.f32 0.0, %v153
    %v155 = vpop.f32.mrf.mxu0
    %v156 = vadd.f32 0.0, %v155
    %157 = vmatmul.bf16.gmra.mxu0 %v63
    %v158 = vpop.f32.mrf.mxu0
    %v159 = vadd.f32 0.0, %v158
    %v160 = vpop.f32.mrf.mxu0
    %v161 = vadd.f32 0.0, %v160
    %162 = vdwg.mxu0
    %163 = vmatpush.bf16.msra.mxu0 0
    %164 = vmatpush.bf16.msra.mxu0 0
    %165 = vmatpush.bf16.msra.mxu0 0
    %166 = vmatpush.bf16.msra.mxu0 0
    %167 = vmatpush.bf16.msra.mxu0 %v124
    %168 = vmatpush.bf16.msra.mxu0 %v123
    %169 = vmatpush.bf16.msra.mxu0 %v122
    %170 = vmatpush.bf16.msra.mxu0 %v121
    %171 = vmatmul.bf16.gmra.mxu0 %v139
    %v172 = vpop.f32.mrf.mxu0
    %v173 = vadd.f32 %v154, %v172
    %v174 = vpop.f32.mrf.mxu0
    %v175 = vadd.f32 %v156, %v174
    %176 = vmatmul.bf16.gmra.mxu0 %v142
    %v177 = vpop.f32.mrf.mxu0
    %v178 = vadd.f32 %v159, %v177
    %v179 = vpop.f32.mrf.mxu0
    %v180 = vadd.f32 %v161, %v179
    %181 = vdwg.mxu0
    %v182 = vadd.f32 %v25, %v173
    %v183 = vadd.f32 %v26, %v175
    %v184 = vadd.f32 %v27, %v178
    %v185 = vadd.f32 %v28, %v180
    %186 = vst.msk [vmem:[#allocation2] sm:$0xff] %vm137, %v182
    %187 = vst.msk [vmem:[#allocation2 + $0x8] sm:$0xff] %vm137, %v183
    %188 = vst.msk [vmem:[#allocation2 + $0x10] sm:$0xff] %vm137, %v184
    %189 = vst.msk [vmem:[#allocation2 + $0x18] sm:$0xff] %vm137, %v185
    // Predicated region
    $region18: #{tpu_custom_call.1} parent=1 // pred_check
      %p190 = pneg %p16
    $region19: #{tpu_custom_call.1} parent=1 // pred_check_branch
      %192 = sbr.rel (%p190) target = $region21
    $region20: #{tpu_custom_call.1} parent=1 // pred_region
      %v193 = vld [vmem:[#allocation2] sm:$0xff]
      %v194 = vld [vmem:[#allocation2 + $0x8] sm:$0xff]
      %v195 = vld [vmem:[#allocation2 + $0x10] sm:$0xff]
      %v196 = vld [vmem:[#allocation2 + $0x18] sm:$0xff]
      %v197 = vld [vmem:[%s2] sm:$0x1]
      %v199 = vperm.slane %v197, 0
      %v201 = vadd.f32 %v193, %v199
      %v202 = vadd.f32 %v194, %v199
      %v203 = vadd.f32 %v195, %v199
      %v204 = vadd.f32 %v196, %v199
      %205 = vst.msk [vmem:[#allocation3] sm:$0xff] %vm137, %v201
      %206 = vst.msk [vmem:[#allocation3 + $0x8] sm:$0xff] %vm137, %v202
      %207 = vst.msk [vmem:[#allocation3 + $0x10] sm:$0xff] %vm137, %v203
      %208 = vst.msk [vmem:[#allocation3 + $0x18] sm:$0xff] %vm137, %v204
    $region21: #{tpu_custom_call.1} parent=1 // pred_fallthru
      _
    // Predicated region
    $region22: #{tpu_custom_call.1} parent=1 // pred_check
      _
    $region23: #{tpu_custom_call.1} parent=1 // pred_check_branch
      %210 = sbr.rel (0) target = $region25
    $region24: #{tpu_custom_call.1} parent=1 // pred_region
      %212 = vsyncadd [#allocation4], 0
      %s213 = sshll.u32 [#allocation3], 4
      %s214 = int_to_ptr.vmem [resolvable:$true] %s213
      %s215 = sshll.u32 %s3, 4
      %s216 = int_to_ptr.hbm [resolvable:$true] %s215
      %221 = dma.vmem_to_hbm [thread:$0]  %s214, 512, %s216, [#allocation4], 128, 128, 8
    $region25: #{tpu_custom_call.1} parent=1 // pred_fallthru
      _
    // Predicated region
    $region26: #{tpu_custom_call.1} parent=1 // pred_check
      _
    $region27: #{tpu_custom_call.1} parent=1 // pred_check_branch
      %223 = sbr.rel (0) target = $region29
    $region28: #{tpu_custom_call.1} parent=1 // pred_region
      %225 = dma.done [#allocation4], 512
    $region29: #{tpu_custom_call.1} parent=1 // pred_fallthru
      _
    %226 = vsyncpa [#allocation4], 1

</llo_original>
